<compile_context>
chip_gen: v7x
topology: tpu7x:2x2x1
jax: 0.10.0
libtpu: 0.0.40
codegen_flags: <defaults>
</compile_context>

<pallas_src>
import functools
import math

import jax
import jax.numpy as jnp
from jax import lax
from jax.experimental import pallas as pl
from jax.experimental.pallas import tpu as pltpu


def _vbn_kernel(x_ref, scale_ref, bias_ref, o_ref, *, eps, inv_n, inv_nm1, unroll):
    # x_ref:     (N, c_tile, l_tile)   VMEM
    # scale_ref: (1, c_tile, 1)        VMEM f32 (broadcast along lanes in-kernel)
    # bias_ref:  (1, c_tile, 1)        VMEM f32
    # o_ref:     (N, c_tile, l_tile)   VMEM
    nb = x_ref.shape[0]
    slab = x_ref.shape[1:]
    zero = jnp.zeros(slab, jnp.float32)

    # Pass 1: mean over the batch axis (per (channel, spatial) element).
    def _sum(i, acc):
        return acc + x_ref[i].astype(jnp.float32)

    mu = lax.fori_loop(0, nb, _sum, zero, unroll=unroll) * inv_n

    # Pass 2: unbiased variance (divisor N-1), torch.var default.
    def _ssq(i, acc):
        d = x_ref[i].astype(jnp.float32) - mu
        return acc + d * d

    ssq = lax.fori_loop(0, nb, _ssq, zero, unroll=unroll)
    inv_std = lax.rsqrt(eps + ssq * inv_nm1)

    # Fold normalization + affine into one multiply-add per element.
    a = inv_std * scale_ref[0]       # (c, l) * (c, 1) -> (c, l)
    b = bias_ref[0]                  # (c, 1), lane-broadcast on use

    # Pass 3: write outputs, streaming over the batch axis.
    def _store(i, carry):
        xi = x_ref[i].astype(jnp.float32)
        o_ref[i] = ((xi - mu) * a + b).astype(o_ref.dtype)
        return carry

    lax.fori_loop(0, nb, _store, 0, unroll=unroll)


def _vmem_capacity_bytes():
    try:
        info = pltpu.get_tpu_info()
        cap = getattr(info, "vmem_capacity_bytes", None)
        if cap:
            return int(cap)
    except Exception:
        pass
    return 64 << 20  # conservative fallback (v7x-sized)


def _choose_tiling(N, Ck, L, in_itemsize, out_itemsize, budget, sub):
    """Largest (c_tile, l_tile) whose live VMEM footprint fits `budget`.

    Footprint = double-buffered input block + double-buffered output block
    + ~4 f32 streaming slabs (mu / accumulator / inv_std*scale / current
    sample) + the tiny scale/bias blocks.
    """
    per_elem = 2 * N * (in_itemsize + out_itemsize) + 4 * 4

    def live_bytes(ct, lt):
        return per_elem * ct * lt + 2 * 2 * ct * 4

    # --- channel tile: all channels if a minimal 128-lane block fits, else the
    # largest sublane-aligned divisor that does (only when Ck % sub == 0, so
    # channel tiles are never ragged).
    c_tile = Ck
    min_l = min(L, 128)
    if live_bytes(Ck, min_l) > budget and Ck % sub == 0:
        c_tile = sub
        for d in range(Ck - sub, sub - 1, -sub):
            if Ck % d == 0 and live_bytes(d, min_l) <= budget:
                c_tile = d
                break

    # --- lane tile: whole lane extent if it fits, else the largest multiple of
    # 128 that fits (ragged trailing lane tile handled by the Pallas pipeline).
    if live_bytes(c_tile, L) <= budget:
        l_tile = L
    else:
        fit = budget // (per_elem * c_tile)
        l_tile = max(128, (fit // 128) * 128)
        l_tile = min(l_tile, L)

    # Keep at least two grid points for largish problems so both TensorCores of
    # a v7x chip (both grid axes are "parallel") get work.
    if (pl.cdiv(Ck, c_tile) * pl.cdiv(L, l_tile) == 1
            and N * Ck * L * in_itemsize >= (2 << 20) and L >= 256):
        l_tile = max(128, pl.cdiv(pl.cdiv(L, 2), 128) * 128)

    return int(c_tile), int(l_tile)


def virtual_batch_norm(x, scale, bias, eps=1e-5):
    """x: (N, C, H, W); scale, bias: (C,)."""
    N, C, H, W = x.shape
    assert N >= 2, "unbiased variance needs at least 2 samples"
    HW = H * W

    in_itemsize = jnp.dtype(x.dtype).itemsize
    sub = {4: 8, 2: 16, 1: 32}.get(in_itemsize, 8)

    # Sublane packing: fold spatial positions into the channel axis (a free,
    # contiguous reshape) so the sublane dim is packed for this dtype.
    k = 1
    if C % sub != 0:
        cand = sub // math.gcd(C, sub)
        if cand > 1 and HW % cand == 0:
            k = cand
    Ck, L = C * k, HW // k

    # Generation-aware VMEM budget / limit.
    cap = _vmem_capacity_bytes()
    if cap >= (96 << 20):                 # v5e / v6e: 128 MiB per core
        budget, vmem_limit = 80 << 20, 100 << 20
    else:                                 # v7x: 64 MiB per core
        budget, vmem_limit = 36 << 20, 48 << 20

    c_tile, l_tile = _choose_tiling(N, Ck, L, in_itemsize, in_itemsize, budget, sub)

    x3 = x.reshape(N, Ck, L)              # free view-like reshape, no extra HBM traffic
    scale3 = jnp.repeat(scale.astype(jnp.float32), k).reshape(1, Ck, 1)
    bias3 = jnp.repeat(bias.astype(jnp.float32), k).reshape(1, Ck, 1)

    # li is the innermost grid axis: the scale/bias block index depends only on
    # ci, so those blocks are not re-DMA'd while sweeping lanes.
    grid = (pl.cdiv(Ck, c_tile), pl.cdiv(L, l_tile))

    unroll = True if N <= 16 else False

    out = pl.pallas_call(
        functools.partial(_vbn_kernel, eps=float(eps),
                          inv_n=1.0 / N, inv_nm1=1.0 / (N - 1.0), unroll=unroll),
        out_shape=jax.ShapeDtypeStruct((N, Ck, L), x.dtype),
        grid_spec=pltpu.PrefetchScalarGridSpec(
            num_scalar_prefetch=0,
            grid=grid,
            in_specs=[
                pl.BlockSpec((N, c_tile, l_tile), lambda ci, li: (0, ci, li)),
                pl.BlockSpec((1, c_tile, 1), lambda ci, li: (0, ci, 0)),
                pl.BlockSpec((1, c_tile, 1), lambda ci, li: (0, ci, 0)),
            ],
            out_specs=pl.BlockSpec((N, c_tile, l_tile), lambda ci, li: (0, ci, li)),
        ),
        compiler_params=pltpu.CompilerParams(
            dimension_semantics=("parallel", "parallel"),
            vmem_limit_bytes=int(vmem_limit)),
    )(x3, scale3, bias3)

    return out.reshape(N, C, H, W)


def _reference(x, scale, bias, eps=1e-5):
    # Pure-JAX reference mirroring the PyTorch module.
    mu = jnp.mean(x, axis=0, keepdims=True)
    var = jnp.sum((x - mu) ** 2, axis=0, keepdims=True) / (x.shape[0] - 1)
    std = jnp.sqrt(eps + var)
    y = (x - mu) / std
    s = scale.reshape(1, -1, 1, 1)
    b = bias.reshape(1, -1, 1, 1)
    return y * s + b


if __name__ == "__main__":
    key = jax.random.PRNGKey(0)
    N, C, H, W = 2, 4, 16, 16

    x = jax.random.normal(key, (N, C, H, W), dtype=jnp.float32)
    # Deterministic parameter init matching nn.Parameter(ones)/(zeros),
    # perturbed deterministically so the affine path is exercised.
    scale = jnp.ones((C,), dtype=jnp.float32) + 0.1 * jnp.arange(C, dtype=jnp.float32)
    bias = jnp.zeros((C,), dtype=jnp.float32) + 0.05 * jnp.arange(C, dtype=jnp.float32)

    out = virtual_batch_norm(x, scale, bias, eps=1e-5)
    out = jax.block_until_ready(out)

    ref = _reference(x, scale, bias, eps=1e-5)
    assert out.shape == (N, C, H, W)
    assert jnp.allclose(out, ref, atol=1e-5, rtol=1e-5), "mismatch vs reference"

    print("KERNEL_OK")
</pallas_src>

<mosaic_0001>
module attributes {stable_mosaic.version = 11 : i64} {
  func.func @_vbn_kernel(%arg0: i32, %arg1: i32, %arg2: memref<2x8x128xf32, #tpu.memory_space<vmem>>, %arg3: memref<1x8x1xf32, #tpu.memory_space<vmem>>, %arg4: memref<1x8x1xf32, #tpu.memory_space<vmem>>, %arg5: memref<2x8x128xf32, #tpu.memory_space<vmem>>) attributes {dimension_semantics = [#tpu.dimension_semantics<parallel>, #tpu.dimension_semantics<parallel>], iteration_bounds = array<i64: 1, 1>, scalar_prefetch = 0 : i64, scratch_operands = 0 : i64, tpu.core_type = #tpu.core_type<tc>, window_params = [{transform_indices = @transform_0, window_bounds = array<i64: 2, 8, 128>}, {transform_indices = @transform_1, window_bounds = array<i64: 1, 8, 1>}, {transform_indices = @transform_2, window_bounds = array<i64: 1, 8, 1>}, {transform_indices = @transform_3, window_bounds = array<i64: 2, 8, 128>}]} {
    %cst = arith.constant 0.000000e+00 : f32
    %0 = vector.broadcast %cst : f32 to vector<8x128xf32>
    %c0_i32 = arith.constant 0 : i32
    %1 = arith.index_cast %c0_i32 : i32 to index
    %c0 = arith.constant 0 : index
    %c0_0 = arith.constant 0 : index
    %2 = vector.load %arg2[%1, %c0, %c0_0] : memref<2x8x128xf32, #tpu.memory_space<vmem>>, vector<1x8x128xf32>
    %3 = vector.shape_cast %2 : vector<1x8x128xf32> to vector<8x128xf32>
    %4 = arith.addf %0, %3 : vector<8x128xf32>
    %c1_i32 = arith.constant 1 : i32
    %5 = arith.index_cast %c1_i32 : i32 to index
    %c0_1 = arith.constant 0 : index
    %c0_2 = arith.constant 0 : index
    %6 = vector.load %arg2[%5, %c0_1, %c0_2] : memref<2x8x128xf32, #tpu.memory_space<vmem>>, vector<1x8x128xf32>
    %7 = vector.shape_cast %6 : vector<1x8x128xf32> to vector<8x128xf32>
    %8 = arith.addf %4, %7 : vector<8x128xf32>
    %c2_i32 = arith.constant 2 : i32
    %cst_3 = arith.constant 5.000000e-01 : f32
    %9 = vector.broadcast %cst_3 : f32 to vector<8x128xf32>
    %10 = arith.mulf %8, %9 : vector<8x128xf32>
    %c0_i32_4 = arith.constant 0 : i32
    %11 = arith.index_cast %c0_i32_4 : i32 to index
    %c0_5 = arith.constant 0 : index
    %c0_6 = arith.constant 0 : index
    %12 = vector.load %arg2[%11, %c0_5, %c0_6] : memref<2x8x128xf32, #tpu.memory_space<vmem>>, vector<1x8x128xf32>
    %13 = vector.shape_cast %12 : vector<1x8x128xf32> to vector<8x128xf32>
    %14 = arith.subf %13, %10 : vector<8x128xf32>
    %15 = arith.mulf %14, %14 : vector<8x128xf32>
    %16 = arith.addf %0, %15 : vector<8x128xf32>
    %c1_i32_7 = arith.constant 1 : i32
    %17 = arith.index_cast %c1_i32_7 : i32 to index
    %c0_8 = arith.constant 0 : index
    %c0_9 = arith.constant 0 : index
    %18 = vector.load %arg2[%17, %c0_8, %c0_9] : memref<2x8x128xf32, #tpu.memory_space<vmem>>, vector<1x8x128xf32>
    %19 = vector.shape_cast %18 : vector<1x8x128xf32> to vector<8x128xf32>
    %20 = arith.subf %19, %10 : vector<8x128xf32>
    %21 = arith.mulf %20, %20 : vector<8x128xf32>
    %22 = arith.addf %16, %21 : vector<8x128xf32>
    %c2_i32_10 = arith.constant 2 : i32
    %cst_11 = arith.constant 1.000000e+00 : f32
    %23 = vector.broadcast %cst_11 : f32 to vector<8x128xf32>
    %24 = arith.mulf %22, %23 : vector<8x128xf32>
    %cst_12 = arith.constant 9.99999974E-6 : f32
    %25 = vector.broadcast %cst_12 : f32 to vector<8x128xf32>
    %26 = arith.addf %25, %24 : vector<8x128xf32>
    %27 = math.rsqrt %26 : vector<8x128xf32>
    %c0_13 = arith.constant 0 : index
    %c0_14 = arith.constant 0 : index
    %c0_15 = arith.constant 0 : index
    %28 = vector.load %arg3[%c0_13, %c0_14, %c0_15] : memref<1x8x1xf32, #tpu.memory_space<vmem>>, vector<1x8x1xf32>
    %29 = vector.shape_cast %28 : vector<1x8x1xf32> to vector<8x1xf32>
    %30 = vector.broadcast %29 : vector<8x1xf32> to vector<8x128xf32>
    %31 = arith.mulf %27, %30 : vector<8x128xf32>
    %c0_16 = arith.constant 0 : index
    %c0_17 = arith.constant 0 : index
    %c0_18 = arith.constant 0 : index
    %32 = vector.load %arg4[%c0_16, %c0_17, %c0_18] : memref<1x8x1xf32, #tpu.memory_space<vmem>>, vector<1x8x1xf32>
    %33 = vector.shape_cast %32 : vector<1x8x1xf32> to vector<8x1xf32>
    %c0_i32_19 = arith.constant 0 : i32
    %34 = arith.index_cast %c0_i32_19 : i32 to index
    %c0_20 = arith.constant 0 : index
    %c0_21 = arith.constant 0 : index
    %35 = vector.load %arg2[%34, %c0_20, %c0_21] : memref<2x8x128xf32, #tpu.memory_space<vmem>>, vector<1x8x128xf32>
    %36 = vector.shape_cast %35 : vector<1x8x128xf32> to vector<8x128xf32>
    %37 = arith.subf %36, %10 : vector<8x128xf32>
    %38 = arith.mulf %37, %31 : vector<8x128xf32>
    %39 = vector.broadcast %33 : vector<8x1xf32> to vector<8x128xf32>
    %40 = arith.addf %38, %39 : vector<8x128xf32>
    %41 = arith.index_cast %c0_i32_19 : i32 to index
    %c0_22 = arith.constant 0 : index
    %c0_23 = arith.constant 0 : index
    %42 = vector.load %arg5[%41, %c0_22, %c0_23] : memref<2x8x128xf32, #tpu.memory_space<vmem>>, vector<1x8x128xf32>
    %43 = vector.shape_cast %42 : vector<1x8x128xf32> to vector<8x128xf32>
    %44 = vector.shape_cast %40 : vector<8x128xf32> to vector<1x8x128xf32>
    tpu.vector_store %arg5[%41, %c0_22, %c0_23], %44 {strides = array<i32>} : memref<2x8x128xf32, #tpu.memory_space<vmem>>, vector<1x8x128xf32>,
    %c1_i32_24 = arith.constant 1 : i32
    %45 = arith.index_cast %c1_i32_24 : i32 to index
    %c0_25 = arith.constant 0 : index
    %c0_26 = arith.constant 0 : index
    %46 = vector.load %arg2[%45, %c0_25, %c0_26] : memref<2x8x128xf32, #tpu.memory_space<vmem>>, vector<1x8x128xf32>
    %47 = vector.shape_cast %46 : vector<1x8x128xf32> to vector<8x128xf32>
    %48 = arith.subf %47, %10 : vector<8x128xf32>
    %49 = arith.mulf %48, %31 : vector<8x128xf32>
    %50 = vector.broadcast %33 : vector<8x1xf32> to vector<8x128xf32>
    %51 = arith.addf %49, %50 : vector<8x128xf32>
    %52 = arith.index_cast %c1_i32_24 : i32 to index
    %c0_27 = arith.constant 0 : index
    %c0_28 = arith.constant 0 : index
    %53 = vector.load %arg5[%52, %c0_27, %c0_28] : memref<2x8x128xf32, #tpu.memory_space<vmem>>, vector<1x8x128xf32>
    %54 = vector.shape_cast %53 : vector<1x8x128xf32> to vector<8x128xf32>
    %55 = vector.shape_cast %51 : vector<8x128xf32> to vector<1x8x128xf32>
    tpu.vector_store %arg5[%52, %c0_27, %c0_28], %55 {strides = array<i32>} : memref<2x8x128xf32, #tpu.memory_space<vmem>>, vector<1x8x128xf32>,
    %c2_i32_29 = arith.constant 2 : i32
    return
  }
  func.func @transform_0(%arg0: i32, %arg1: i32) -> (i32, i32, i32) {
    %c0_i32 = arith.constant 0 : i32
    %c0_i32_0 = arith.constant 0 : i32
    return %c0_i32, %arg0, %arg1 : i32, i32, i32
  }
  func.func @transform_1(%arg0: i32, %arg1: i32) -> (i32, i32, i32) {
    %c0_i32 = arith.constant 0 : i32
    %c0_i32_0 = arith.constant 0 : i32
    %c0_i32_1 = arith.constant 0 : i32
    return %c0_i32, %arg0, %c0_i32_0 : i32, i32, i32
  }
  func.func @transform_2(%arg0: i32, %arg1: i32) -> (i32, i32, i32) {
    %c0_i32 = arith.constant 0 : i32
    %c0_i32_0 = arith.constant 0 : i32
    %c0_i32_1 = arith.constant 0 : i32
    return %c0_i32, %arg0, %c0_i32_0 : i32, i32, i32
  }
  func.func @transform_3(%arg0: i32, %arg1: i32) -> (i32, i32, i32) {
    %c0_i32 = arith.constant 0 : i32
    %c0_i32_0 = arith.constant 0 : i32
    return %c0_i32, %arg0, %arg1 : i32, i32, i32
  }
}

</mosaic_0001>

<llo_original>
// kernel: tpu_custom_call.1
$region0: #{tpu_custom_call.1}
  #allocation0 [shape = 'u32[]', space=smem, size = 0x4, offset = 0x4, fixed_abs, tag = 'smem constant byte address 0x4 - core index']
  #allocation1 [shape = 'u32[144,128]{1,0:T(1,128)}', space=vmem, size = 0x12000, scoped, tag = 'internal scratch']
  %s0 = inlined_call_operand.vmem [shape: f32[2,8,128], index: 0, kind: input, shape index: {}]
  %s1 = inlined_call_operand.vmem [shape: f32[1,8,1], index: 1, kind: input, shape index: {}]
  %s2 = inlined_call_operand.vmem [shape: f32[1,8,1], index: 2, kind: input, shape index: {}]
  %s3 = inlined_call_operand.hbm [shape: f32[2,8,128], index: 3, kind: output, shape index: {}]
  %s4 = sld [smem:[#allocation0]]
  $region22: #{tpu_custom_call.1} parent=0
    _
  %s6 = ssub.s32 1, %s4
  %s7 = scalar_select 0, %s6, %s4
  $region1: #{tpu_custom_call.1} parent=0
    #allocation2 [shape = 'u8[8192]{0}', space=vmem, size = 0x2000, scoped, tag = 'output window, operand 0, single buffered']
    #allocation3 [shape = 's32[1]{0}', space=sflag, size = 0x4, scoped, tag = 'scoped memory for tpu_custom_call.1']
    %8 = vsyncpa [#allocation3], 0
    // Predicated region
    $region2: #{tpu_custom_call.1} parent=1 // pred_check
      _
    $region3: #{tpu_custom_call.1} parent=1 // pred_check_branch
      %10 = sbr.rel (0) target = $region5
    $region4: #{tpu_custom_call.1} parent=1 // pred_region
      _
    $region5: #{tpu_custom_call.1} parent=1 // pred_fallthru
      _
    // Predicated region
    $region6: #{tpu_custom_call.1} parent=1 // pred_check
      _
    $region7: #{tpu_custom_call.1} parent=1 // pred_check_branch
      %12 = sbr.rel (0) target = $region9
    $region8: #{tpu_custom_call.1} parent=1 // pred_region
      _
    $region9: #{tpu_custom_call.1} parent=1 // pred_fallthru
      _
    // Predicated region
    $region10: #{tpu_custom_call.1} parent=1 // pred_check
      _
    $region11: #{tpu_custom_call.1} parent=1 // pred_check_branch
      %14 = sbr.rel (0) target = $region13
    $region12: #{tpu_custom_call.1} parent=1 // pred_region
      _
    $region13: #{tpu_custom_call.1} parent=1 // pred_fallthru
      _
    %v15 = vld [vmem:[%s0] sm:$0xff]
    %v16 = vadd.f32 %v15, 0.0
    %s17 = scalar_lea.vmem %s0, 8
    %v18 = vld [vmem:[%s17] sm:$0xff]
    %v19 = vadd.f32 %v16, %v18
    %v20 = vmul.f32 %v19, 0.5
    %v21 = vsub.f32 %v15, %v20
    %v22 = vmul.f32 %v21, %v21
    %v23 = vadd.f32 %v22, 0.0
    %v24 = vsub.f32 %v18, %v20
    %v25 = vmul.f32 %v24, %v24
    %v26 = vadd.f32 %v23, %v25
    %v27 = vadd.f32 %v26, 1e-05
    %v28 = vrsqrt.pop %v27
    %v29 = vld [vmem:[%s1] sm:$0xff]
    %31 = vset.pattern.permute.xlu0 0
    %32 = vperm.xlu0 %31, %v29
    %v33 = vpop.permute.xlu0 %32
    %v35 = vmul.f32 %v28, %v33
    %v36 = vld [vmem:[%s2] sm:$0xff]
    %v37 = vmul.f32 %v21, %v35
    %39 = vset.pattern.permute.xlu0 0
    %40 = vperm.xlu0 %39, %v36
    %v41 = vpop.permute.xlu0 %40
    %v43 = vadd.f32 %v37, %v41
    %44 = vst [vmem:[#allocation2] sm:$0xff] %v43
    %v45 = vld [vmem:[%s17] sm:$0xff]
    %v46 = vsub.f32 %v45, %v20
    %v47 = vmul.f32 %v46, %v35
    %v48 = vadd.f32 %v47, %v41
    %s49 = scalar_lea.vmem [#allocation2], 8
    %50 = vst [vmem:[%s49] sm:$0xff] %v48
    // Predicated region
    $region14: #{tpu_custom_call.1} parent=1 // pred_check
      _
    $region15: #{tpu_custom_call.1} parent=1 // pred_check_branch
      %52 = sbr.rel (0) target = $region17
    $region16: #{tpu_custom_call.1} parent=1 // pred_region
      %s54 = ssub.s32 256, 256
      %55 = vsyncadd [#allocation3], %s54
      %s56 = sshll.u32 [#allocation2], 4
      %s57 = int_to_ptr.vmem [resolvable:$true] %s56
      %62 = dma.vmem_to_hbm [thread:$0]  %s57, 256, %s3, [#allocation3], 128, 128, 8
    $region17: #{tpu_custom_call.1} parent=1 // pred_fallthru
      _
    // Predicated region
    $region18: #{tpu_custom_call.1} parent=1 // pred_check
      _
    $region19: #{tpu_custom_call.1} parent=1 // pred_check_branch
      %64 = sbr.rel (0) target = $region21
    $region20: #{tpu_custom_call.1} parent=1 // pred_region
      %65 = dma.done [#allocation3], 256
    $region21: #{tpu_custom_call.1} parent=1 // pred_fallthru
      _
    %66 = vsyncpa [#allocation3], 1

</llo_original>
